<compile_context>
chip_gen: v7x
topology: tpu7x:2x2x1
jax: 0.10.0
libtpu: 0.0.40
codegen_flags: <defaults>
</compile_context>

<pallas_src>
import jax
import jax.numpy as jnp
import numpy as np
from jax.experimental import pallas as pl
from jax.experimental.pallas import tpu as pltpu


def hybrid_kernel(f_ref, cc_ref, ss_ref, p2_ref, head2_ref, b_ref, out_ref):
    """Whole HybridModel.forward for the (padded) batch, resident in VMEM."""
    f = f_ref[...]                     # (Bp, 2*HW) f32, [Re | Im] along lanes
    hw = f.shape[1] // 2
    n_layers = cc_ref.shape[0]
    p2 = p2_ref[...]                   # (2*HW, 2*HW) bf16 real form of P^T

    # statically unrolled over optical elements so the LLO scheduler can
    # overlap layer l+1's VPU/XLU modulation with layer l's MXU drain.
    for l in range(n_layers):
        cc = cc_ref[l:l + 1, :]        # (1, 2*HW) = [cos | cos]
        ss = ss_ref[l:l + 1, :]        # (1, 2*HW) = [-sin | sin]
        # phase modulator: [Re*c - Im*s | Im*c + Re*s]; the cross terms come
        # from swapping the lane halves with an XLU roll (free slot vs VPU).
        m = f * cc + pltpu.roll(f, hw, axis=1) * ss
        # propagator: one wide bf16 matmul (f32 accumulation) per layer.
        f = jnp.dot(m.astype(jnp.bfloat16), p2,
                    preferred_element_type=jnp.float32)          # (Bp, 2*HW)

    # detectors + electronic head: |f|^2 @ head == (f*f) @ [head; head]
    out_ref[...] = (jnp.dot(f * f, head2_ref[...],
                            preferred_element_type=jnp.float32)
                    + b_ref[...])                                 # (Bp, C_pad)


def hybrid_forward(fr, fi, cos_ph, sin_ph, p_re_t, p_im_t, dmask_t, w_t, bias):
    """Wrapper: layout plumbing + pallas_call.  Returns (B, C) f32."""
    B, HW = fr.shape
    C = w_t.shape[1]
    HW2 = 2 * HW

    # sublane-dense batch, lane-dense output (pure padding, sliced back below)
    B_pad = max(8, -(-B // 8) * 8)
    C_pad = max(128, -(-C // 128) * 128)

    # field as one lane-concatenated tile [Re | Im]
    f0 = jnp.zeros((B_pad, HW2), jnp.float32)
    f0 = f0.at[:B, :HW].set(fr).at[:B, HW:].set(fi)

    # modulation rows: [cos | cos] and [-sin | sin] (batch-independent)
    cc = jnp.concatenate([cos_ph, cos_ph], axis=1)                 # (L, 2*HW)
    ss = jnp.concatenate([-sin_ph, sin_ph], axis=1)                # (L, 2*HW)

    # real 2x2-block embedding of the complex propagator (one bf16 operand)
    top = jnp.concatenate([p_re_t, p_im_t], axis=1)                # (HW, 2*HW)
    bot = jnp.concatenate([-p_im_t, p_re_t], axis=1)               # (HW, 2*HW)
    p2 = jnp.concatenate([top, bot], axis=0).astype(jnp.bfloat16)  # (2HW, 2HW)

    # exact fusion of detectors (HW -> D) and electronic Linear (D -> C),
    # duplicated so the Re^2 + Im^2 sum happens inside the MXU contraction.
    head = jnp.dot(dmask_t, w_t)                                   # (HW, C)
    head_pad = jnp.zeros((HW, C_pad), jnp.float32).at[:, :C].set(head)
    head2 = jnp.concatenate([head_pad, head_pad], axis=0)          # (2HW, C_pad)
    bias_pad = jnp.zeros((1, C_pad), jnp.float32).at[:, :C].set(
        bias.reshape(1, C))

    args = (f0, cc, ss, p2, head2, bias_pad)

    def full_spec(shape):
        return pl.BlockSpec(shape, lambda i, _s=shape: (0,) * len(_s))

    # NOTE: at this size (HW=256) everything fits VMEM trivially; if H/W ever
    # scales up, switch the propagator to a tiled grid with a VMEM accumulator
    # and a 'parallel' leading axis (v7x: 64 MiB VMEM, 2 TensorCores).
    out = pl.pallas_call(
        hybrid_kernel,
        out_shape=jax.ShapeDtypeStruct((B_pad, C_pad), jnp.float32),
        grid=(1,),
        in_specs=[full_spec(a.shape) for a in args],
        out_specs=full_spec((B_pad, C_pad)),
        compiler_params=pltpu.CompilerParams(
            dimension_semantics=("arbitrary",)),
    )(*args)
    return out[:B, :C]


if __name__ == "__main__":
    B, H, W = 2, 16, 16          # batch, field spatial dims
    HW = H * W
    L = 2                        # optical elements (modulator + propagator pairs)
    D = 10                       # detectors
    C = 4                        # electronic output size

    key = jax.random.PRNGKey(0)
    k_fr, k_fi, k_ph, k_dm, k_w, k_b = jax.random.split(key, 6)

    # input complex field
    field_re = jax.random.normal(k_fr, (B, H, W), jnp.float32)
    field_im = jax.random.normal(k_fi, (B, H, W), jnp.float32)

    # phase masks for each modulator layer
    phases = jax.random.uniform(k_ph, (L, H, W), jnp.float32,
                                0.0, 2.0 * np.pi)

    # discrete-Fresnel-like 1-D propagation kernel, lifted to 2-D via Kronecker
    idx = np.arange(H, dtype=np.float64)
    alpha = 0.37
    p1d = np.exp(1j * alpha * (idx[:, None] - idx[None, :]) ** 2) / np.sqrt(H)
    p2d = np.kron(p1d, p1d).astype(np.complex64)                  # (HW, HW)

    # detector masks and electronic Linear(D -> C) parameters
    dmask = jax.random.uniform(k_dm, (D, HW), jnp.float32)
    w = jax.random.normal(k_w, (C, D), jnp.float32) * 0.1
    b = jax.random.normal(k_b, (C,), jnp.float32) * 0.01

    # glue: flatten field, pre-transpose operators, split complex into re/im
    fr = field_re.reshape(B, HW)
    fi = field_im.reshape(B, HW)
    ph_flat = phases.reshape(L, HW)
    cos_ph = jnp.cos(ph_flat)
    sin_ph = jnp.sin(ph_flat)
    p_re_t = jnp.asarray(p2d.real.T)
    p_im_t = jnp.asarray(p2d.imag.T)
    dmask_t = dmask.T
    w_t = w.T

    out = hybrid_forward(fr, fi, cos_ph, sin_ph, p_re_t, p_im_t,
                         dmask_t, w_t, b)
    out = jax.block_until_ready(out)

    # pure-JAX reference (complex64, f32 operators) of HybridModel.forward
    f = (fr + 1j * fi).astype(jnp.complex64)
    p_c = jnp.asarray(p2d)
    for l in range(L):
        f = f * jnp.exp(1j * ph_flat[l])[None, :]
        f = f @ p_c.T
    signals_ref = (jnp.abs(f) ** 2) @ dmask.T
    ref = signals_ref @ w.T + b[None, :]
    ref = np.asarray(ref)

    assert out.shape == (B, C) and out.dtype == jnp.float32
    # Kernel feeds the propagator matmuls with bf16 operands (f32 accumulate),
    # so allow ~2% relative error, with the absolute floor scaled to the
    # output magnitude (outputs are O(10-100); protects near-zero components).
    atol = max(2e-2, 2e-2 * float(np.max(np.abs(ref))))
    np.testing.assert_allclose(np.asarray(out), ref, rtol=2e-2, atol=atol)
    # TODO(synk): visualize()/volume()/profile()/planes() are matplotlib/host
    # plotting utilities with no Pallas equivalent; only forward() is ported.
    print("KERNEL_OK")
</pallas_src>

<mosaic_0001>
module attributes {stable_mosaic.version = 11 : i64} {
  func.func @hybrid_kernel(%arg0: i32, %arg1: memref<8x512xf32, #tpu.memory_space<vmem>>, %arg2: memref<2x512xf32, #tpu.memory_space<vmem>>, %arg3: memref<2x512xf32, #tpu.memory_space<vmem>>, %arg4: memref<512x512xbf16, #tpu.memory_space<vmem>>, %arg5: memref<512x128xf32, #tpu.memory_space<vmem>>, %arg6: memref<1x128xf32, #tpu.memory_space<vmem>>, %arg7: memref<8x128xf32, #tpu.memory_space<vmem>>) attributes {dimension_semantics = [#tpu.dimension_semantics<arbitrary>], iteration_bounds = array<i64: 1>, scalar_prefetch = 0 : i64, scratch_operands = 0 : i64, tpu.core_type = #tpu.core_type<tc>, window_params = [{pipeline_mode = #tpu.pipeline_mode<synchronous>, transform_indices = @transform_0, window_bounds = array<i64: 8, 512>}, {pipeline_mode = #tpu.pipeline_mode<synchronous>, transform_indices = @transform_1, window_bounds = array<i64: 2, 512>}, {pipeline_mode = #tpu.pipeline_mode<synchronous>, transform_indices = @transform_2, window_bounds = array<i64: 2, 512>}, {pipeline_mode = #tpu.pipeline_mode<synchronous>, transform_indices = @transform_3, window_bounds = array<i64: 512, 512>}, {pipeline_mode = #tpu.pipeline_mode<synchronous>, transform_indices = @transform_4, window_bounds = array<i64: 512, 128>}, {pipeline_mode = #tpu.pipeline_mode<synchronous>, transform_indices = @transform_5, window_bounds = array<i64: 1, 128>}, {pipeline_mode = #tpu.pipeline_mode<synchronous>, transform_indices = @transform_6, window_bounds = array<i64: 8, 128>}]} {
    %c0 = arith.constant 0 : index
    %c0_0 = arith.constant 0 : index
    %0 = vector.load %arg1[%c0, %c0_0] : memref<8x512xf32, #tpu.memory_space<vmem>>, vector<8x512xf32>
    %c0_1 = arith.constant 0 : index
    %c0_2 = arith.constant 0 : index
    %1 = vector.load %arg4[%c0_1, %c0_2] : memref<512x512xbf16, #tpu.memory_space<vmem>>, vector<512x512xbf16>
    %c0_3 = arith.constant 0 : index
    %c0_4 = arith.constant 0 : index
    %2 = vector.load %arg2[%c0_3, %c0_4] : memref<2x512xf32, #tpu.memory_space<vmem>>, vector<1x512xf32>
    %c0_5 = arith.constant 0 : index
    %c0_6 = arith.constant 0 : index
    %3 = vector.load %arg3[%c0_5, %c0_6] : memref<2x512xf32, #tpu.memory_space<vmem>>, vector<1x512xf32>
    %4 = vector.broadcast %2 : vector<1x512xf32> to vector<8x512xf32>
    %5 = arith.mulf %0, %4 : vector<8x512xf32>
    %c256_i32 = arith.constant 256 : i32
    %6 = tpu.dynamic_rotate %0 by %c256_i32 dim 1 : vector<8x512xf32>, i32 -> vector<8x512xf32>
    %7 = vector.broadcast %3 : vector<1x512xf32> to vector<8x512xf32>
    %8 = arith.mulf %6, %7 : vector<8x512xf32>
    %9 = arith.addf %5, %8 : vector<8x512xf32>
    %10 = arith.truncf %9 : vector<8x512xf32> to vector<8x512xbf16>
    %cst = arith.constant dense<0.000000e+00> : vector<8x512xf32>
    %11 = tpu.matmul %10, %1, %cst {dimension_numbers = #tpu.dot_dimension_numbers<[1], [0], [0], [1], [0, 0, 1, 1], [], []>} : vector<8x512xbf16>, vector<512x512xbf16>, vector<8x512xf32> -> vector<8x512xf32>
    %c1 = arith.constant 1 : index
    %c0_7 = arith.constant 0 : index
    %12 = vector.load %arg2[%c1, %c0_7] : memref<2x512xf32, #tpu.memory_space<vmem>>, vector<1x512xf32>
    %c1_8 = arith.constant 1 : index
    %c0_9 = arith.constant 0 : index
    %13 = vector.load %arg3[%c1_8, %c0_9] : memref<2x512xf32, #tpu.memory_space<vmem>>, vector<1x512xf32>
    %14 = vector.broadcast %12 : vector<1x512xf32> to vector<8x512xf32>
    %15 = arith.mulf %11, %14 : vector<8x512xf32>
    %c256_i32_10 = arith.constant 256 : i32
    %16 = tpu.dynamic_rotate %11 by %c256_i32_10 dim 1 : vector<8x512xf32>, i32 -> vector<8x512xf32>
    %17 = vector.broadcast %13 : vector<1x512xf32> to vector<8x512xf32>
    %18 = arith.mulf %16, %17 : vector<8x512xf32>
    %19 = arith.addf %15, %18 : vector<8x512xf32>
    %20 = arith.truncf %19 : vector<8x512xf32> to vector<8x512xbf16>
    %cst_11 = arith.constant dense<0.000000e+00> : vector<8x512xf32>
    %21 = tpu.matmul %20, %1, %cst_11 {dimension_numbers = #tpu.dot_dimension_numbers<[1], [0], [0], [1], [0, 0, 1, 1], [], []>} : vector<8x512xbf16>, vector<512x512xbf16>, vector<8x512xf32> -> vector<8x512xf32>
    %22 = arith.mulf %21, %21 : vector<8x512xf32>
    %c0_12 = arith.constant 0 : index
    %c0_13 = arith.constant 0 : index
    %23 = vector.load %arg5[%c0_12, %c0_13] : memref<512x128xf32, #tpu.memory_space<vmem>>, vector<512x128xf32>
    %cst_14 = arith.constant dense<0.000000e+00> : vector<8x128xf32>
    %24 = tpu.matmul %22, %23, %cst_14 {dimension_numbers = #tpu.dot_dimension_numbers<[1], [0], [0], [1], [0, 0, 1, 1], [], []>} : vector<8x512xf32>, vector<512x128xf32>, vector<8x128xf32> -> vector<8x128xf32>
    %c0_15 = arith.constant 0 : index
    %c0_16 = arith.constant 0 : index
    %25 = vector.load %arg6[%c0_15, %c0_16] : memref<1x128xf32, #tpu.memory_space<vmem>>, vector<1x128xf32>
    %26 = vector.broadcast %25 : vector<1x128xf32> to vector<8x128xf32>
    %27 = arith.addf %24, %26 : vector<8x128xf32>
    %c0_17 = arith.constant 0 : index
    %c0_18 = arith.constant 0 : index
    %28 = vector.load %arg7[%c0_17, %c0_18] : memref<8x128xf32, #tpu.memory_space<vmem>>, vector<8x128xf32>
    tpu.vector_store %arg7[%c0_17, %c0_18], %27 {strides = array<i32>} : memref<8x128xf32, #tpu.memory_space<vmem>>, vector<8x128xf32>,
    return
  }
  func.func @transform_0(%arg0: i32) -> (i32, i32) {
    %c0_i32 = arith.constant 0 : i32
    %c0_i32_0 = arith.constant 0 : i32
    %c0_i32_1 = arith.constant 0 : i32
    return %c0_i32, %c0_i32_0 : i32, i32
  }
  func.func @transform_1(%arg0: i32) -> (i32, i32) {
    %c0_i32 = arith.constant 0 : i32
    %c0_i32_0 = arith.constant 0 : i32
    %c0_i32_1 = arith.constant 0 : i32
    return %c0_i32, %c0_i32_0 : i32, i32
  }
  func.func @transform_2(%arg0: i32) -> (i32, i32) {
    %c0_i32 = arith.constant 0 : i32
    %c0_i32_0 = arith.constant 0 : i32
    %c0_i32_1 = arith.constant 0 : i32
    return %c0_i32, %c0_i32_0 : i32, i32
  }
  func.func @transform_3(%arg0: i32) -> (i32, i32) {
    %c0_i32 = arith.constant 0 : i32
    %c0_i32_0 = arith.constant 0 : i32
    %c0_i32_1 = arith.constant 0 : i32
    return %c0_i32, %c0_i32_0 : i32, i32
  }
  func.func @transform_4(%arg0: i32) -> (i32, i32) {
    %c0_i32 = arith.constant 0 : i32
    %c0_i32_0 = arith.constant 0 : i32
    %c0_i32_1 = arith.constant 0 : i32
    return %c0_i32, %c0_i32_0 : i32, i32
  }
  func.func @transform_5(%arg0: i32) -> (i32, i32) {
    %c0_i32 = arith.constant 0 : i32
    %c0_i32_0 = arith.constant 0 : i32
    %c0_i32_1 = arith.constant 0 : i32
    return %c0_i32, %c0_i32_0 : i32, i32
  }
  func.func @transform_6(%arg0: i32) -> (i32, i32) {
    %c0_i32 = arith.constant 0 : i32
    %c0_i32_0 = arith.constant 0 : i32
    %c0_i32_1 = arith.constant 0 : i32
    return %c0_i32, %c0_i32_0 : i32, i32
  }
}

</mosaic_0001>

<llo_original>
// kernel: tpu_custom_call.1
$region0: #{tpu_custom_call.1}
  #allocation0 [shape = 'u32[]', space=smem, size = 0x4, offset = 0x4, fixed_abs, tag = 'smem constant byte address 0x4 - core index']
  #allocation1 [shape = 'u32[144,128]{1,0:T(1,128)}', space=vmem, size = 0x12000, scoped, tag = 'internal scratch']
  %s0 = inlined_call_operand.hbm [shape: f32[8,512], index: 0, kind: input, shape index: {}]
  %s1 = inlined_call_operand.hbm [shape: f32[2,512], index: 1, kind: input, shape index: {}]
  %s2 = inlined_call_operand.hbm [shape: f32[2,512], index: 2, kind: input, shape index: {}]
  %s3 = inlined_call_operand.hbm [shape: bf16[512,512], index: 3, kind: input, shape index: {}]
  %s4 = inlined_call_operand.hbm [shape: f32[512,128], index: 4, kind: input, shape index: {}]
  %s5 = inlined_call_operand.vmem [shape: f32[1,128], index: 5, kind: input, shape index: {}]
  %s6 = inlined_call_operand.hbm [shape: f32[8,128], index: 6, kind: output, shape index: {}]
  %s7 = sld [smem:[#allocation0]]
  $region54: #{tpu_custom_call.1} parent=0
    _
  %s9 = ssub.s32 1, %s7
  %s10 = scalar_select 0, %s9, %s7
  $region1: #{tpu_custom_call.1} parent=0
    #allocation2 [shape = 'u8[16384]{0}', space=vmem, size = 0x4000, scoped, tag = 'input window, operand 0, single buffered']
    #allocation3 [shape = 's32[1]{0}', space=sflag, size = 0x4, scoped, tag = 'scoped memory for tpu_custom_call.1']
    #allocation4 [shape = 's32[1]{0}', space=sflag, size = 0x4, scoped, tag = 'scoped memory for tpu_custom_call.1']
    #allocation5 [shape = 'u8[4096]{0}', space=vmem, size = 0x1000, scoped, tag = 'input window, operand 1, single buffered']
    #allocation6 [shape = 's32[1]{0}', space=sflag, size = 0x4, scoped, tag = 'scoped memory for tpu_custom_call.1']
    #allocation7 [shape = 'u8[4096]{0}', space=vmem, size = 0x1000, scoped, tag = 'input window, operand 2, single buffered']
    #allocation8 [shape = 'u8[524288]{0}', space=vmem, size = 0x80000, scoped, tag = 'input window, operand 3, single buffered']
    #allocation9 [shape = 's32[1]{0}', space=sflag, size = 0x4, scoped, tag = 'scoped memory for tpu_custom_call.1']
    #allocation10 [shape = 'u8[262144]{0}', space=vmem, size = 0x40000, scoped, tag = 'input window, operand 4, single buffered']
    #allocation11 [shape = 'u8[4096]{0}', space=vmem, size = 0x1000, scoped, tag = 'output window, operand 0, single buffered']
    %11 = vsyncpa [#allocation3], 0
    %12 = vsyncpa [#allocation6], 0
    %13 = vsyncpa [#allocation9], 0
    %14 = vsyncpa [#allocation4], 0
    // Predicated region
    $region2: #{tpu_custom_call.1} parent=1 // pred_check
      _
    $region3: #{tpu_custom_call.1} parent=1 // pred_check_branch
      %16 = sbr.rel (0) target = $region5
    $region4: #{tpu_custom_call.1} parent=1 // pred_region
      %s18 = ssub.s32 512, 512
      %19 = vsyncadd [#allocation3], %s18
      %s21 = sshll.u32 [#allocation2], 4
      %s22 = int_to_ptr.vmem [resolvable:$true] %s21
      %24 = dma.hbm_to_vmem [thread:$0]  %s0, 512, %s22, [#allocation3]
    $region5: #{tpu_custom_call.1} parent=1 // pred_fallthru
      _
    // Predicated region
    $region6: #{tpu_custom_call.1} parent=1 // pred_check
      _
    $region7: #{tpu_custom_call.1} parent=1 // pred_check_branch
      %26 = sbr.rel (0) target = $region9
    $region8: #{tpu_custom_call.1} parent=1 // pred_region
      %s28 = ssub.s32 128, 128
      %29 = vsyncadd [#allocation6], %s28
      %s31 = sshll.u32 [#allocation5], 4
      %s32 = int_to_ptr.vmem [resolvable:$true] %s31
      %34 = dma.hbm_to_vmem [thread:$0]  %s1, 128, %s32, [#allocation6]
    $region9: #{tpu_custom_call.1} parent=1 // pred_fallthru
      _
    // Predicated region
    $region10: #{tpu_custom_call.1} parent=1 // pred_check
      _
    $region11: #{tpu_custom_call.1} parent=1 // pred_check_branch
      %36 = sbr.rel (0) target = $region13
    $region12: #{tpu_custom_call.1} parent=1 // pred_region
      %s38 = ssub.s32 128, 128
      %39 = vsyncadd [#allocation6], %s38
      %s41 = sshll.u32 [#allocation7], 4
      %s42 = int_to_ptr.vmem [resolvable:$true] %s41
      %44 = dma.hbm_to_vmem [thread:$0]  %s2, 128, %s42, [#allocation6]
    $region13: #{tpu_custom_call.1} parent=1 // pred_fallthru
      _
    // Predicated region
    $region14: #{tpu_custom_call.1} parent=1 // pred_check
      _
    $region15: #{tpu_custom_call.1} parent=1 // pred_check_branch
      %46 = sbr.rel (0) target = $region17
    $region16: #{tpu_custom_call.1} parent=1 // pred_region
      %s48 = ssub.s32 16384, 16384
      %49 = vsyncadd [#allocation9], %s48
      %s50 = sshll.u32 [#allocation8], 4
      %s51 = int_to_ptr.vmem [resolvable:$true] %s50
      %56 = dma.hbm_to_vmem [thread:$0]  %s3, 16384, %s51, [#allocation9], 256, 256, 16
    $region17: #{tpu_custom_call.1} parent=1 // pred_fallthru
      _
    // Predicated region
    $region18: #{tpu_custom_call.1} parent=1 // pred_check
      _
    $region19: #{tpu_custom_call.1} parent=1 // pred_check_branch
      %58 = sbr.rel (0) target = $region21
    $region20: #{tpu_custom_call.1} parent=1 // pred_region
      %s60 = ssub.s32 8192, 8192
      %61 = vsyncadd [#allocation9], %s60
      %s62 = sshll.u32 [#allocation10], 4
      %s63 = int_to_ptr.vmem [resolvable:$true] %s62
      %68 = dma.hbm_to_vmem [thread:$0]  %s4, 8192, %s63, [#allocation9], 128, 128, 8
    $region21: #{tpu_custom_call.1} parent=1 // pred_fallthru
      _
    // Predicated region
    $region22: #{tpu_custom_call.1} parent=1 // pred_check
      _
    $region23: #{tpu_custom_call.1} parent=1 // pred_check_branch
      %70 = sbr.rel (0) target = $region25
    $region24: #{tpu_custom_call.1} parent=1 // pred_region
      _
    $region25: #{tpu_custom_call.1} parent=1 // pred_fallthru
      _
    // Predicated region
    $region26: #{tpu_custom_call.1} parent=1 // pred_check
      _
    $region27: #{tpu_custom_call.1} parent=1 // pred_check_branch
      %72 = sbr.rel (0) target = $region29
    $region28: #{tpu_custom_call.1} parent=1 // pred_region
      %73 = dma.done [#allocation3], 512
    $region29: #{tpu_custom_call.1} parent=1 // pred_fallthru
      _
    // Predicated region
    $region30: #{tpu_custom_call.1} parent=1 // pred_check
      _
    $region31: #{tpu_custom_call.1} parent=1 // pred_check_branch
      %75 = sbr.rel (0) target = $region33
    $region32: #{tpu_custom_call.1} parent=1 // pred_region
      %76 = dma.done [#allocation6], 128
    $region33: #{tpu_custom_call.1} parent=1 // pred_fallthru
      _
    // Predicated region
    $region34: #{tpu_custom_call.1} parent=1 // pred_check
      _
    $region35: #{tpu_custom_call.1} parent=1 // pred_check_branch
      %78 = sbr.rel (0) target = $region37
    $region36: #{tpu_custom_call.1} parent=1 // pred_region
      %79 = dma.done [#allocation6], 128
    $region37: #{tpu_custom_call.1} parent=1 // pred_fallthru
      _
    // Predicated region
    $region38: #{tpu_custom_call.1} parent=1 // pred_check
      _
    $region39: #{tpu_custom_call.1} parent=1 // pred_check_branch
      %81 = sbr.rel (0) target = $region41
    $region40: #{tpu_custom_call.1} parent=1 // pred_region
      %82 = dma.done [#allocation9], 16384
    $region41: #{tpu_custom_call.1} parent=1 // pred_fallthru
      _
    // Predicated region
    $region42: #{tpu_custom_call.1} parent=1 // pred_check
      _
    $region43: #{tpu_custom_call.1} parent=1 // pred_check_branch
      %84 = sbr.rel (0) target = $region45
    $region44: #{tpu_custom_call.1} parent=1 // pred_region
      %85 = dma.done [#allocation9], 8192
    $region45: #{tpu_custom_call.1} parent=1 // pred_fallthru
      _
    %v86 = vld [vmem:[#allocation2] sm:$0xff]
    %v87 = vld [vmem:[#allocation2 + $0x8] sm:$0xff]
    %v88 = vld [vmem:[#allocation2 + $0x10] sm:$0xff]
    %v89 = vld [vmem:[#allocation2 + $0x18] sm:$0xff]
    %v90 = vld [vmem:[#allocation8] sm:$0xff]
    %v91 = vld [vmem:[#allocation8 + $0x8] sm:$0xff]
    %v92 = vld [vmem:[#allocation8 + $0x10] sm:$0xff]
    %v93 = vld [vmem:[#allocation8 + $0x18] sm:$0xff]
    %v94 = vld [vmem:[#allocation8 + $0x20] sm:$0xff]
    %v95 = vld [vmem:[#allocation8 + $0x28] sm:$0xff]
    %v96 = vld [vmem:[#allocation8 + $0x30] sm:$0xff]
    %v97 = vld [vmem:[#allocation8 + $0x38] sm:$0xff]
    %v98 = vld [vmem:[#allocation8 + $0x40] sm:$0xff]
    %v99 = vld [vmem:[#allocation8 + $0x48] sm:$0xff]
    %v100 = vld [vmem:[#allocation8 + $0x50] sm:$0xff]
    %v101 = vld [vmem:[#allocation8 + $0x58] sm:$0xff]
    %v102 = vld [vmem:[#allocation8 + $0x60] sm:$0xff]
    %v103 = vld [vmem:[#allocation8 + $0x68] sm:$0xff]
    %v104 = vld [vmem:[#allocation8 + $0x70] sm:$0xff]
    %v105 = vld [vmem:[#allocation8 + $0x78] sm:$0xff]
    %v106 = vld [vmem:[#allocation8 + $0x80] sm:$0xff]
    %v107 = vld [vmem:[#allocation8 + $0x88] sm:$0xff]
    %v108 = vld [vmem:[#allocation8 + $0x90] sm:$0xff]
    %v109 = vld [vmem:[#allocation8 + $0x98] sm:$0xff]
    %v110 = vld [vmem:[#allocation8 + $0xa0] sm:$0xff]
    %v111 = vld [vmem:[#allocation8 + $0xa8] sm:$0xff]
    %v112 = vld [vmem:[#allocation8 + $0xb0] sm:$0xff]
    %v113 = vld [vmem:[#allocation8 + $0xb8] sm:$0xff]
    %v114 = vld [vmem:[#allocation8 + $0xc0] sm:$0xff]
    %v115 = vld [vmem:[#allocation8 + $0xc8] sm:$0xff]
    %v116 = vld [vmem:[#allocation8 + $0xd0] sm:$0xff]
    %v117 = vld [vmem:[#allocation8 + $0xd8] sm:$0xff]
    %v118 = vld [vmem:[#allocation8 + $0xe0] sm:$0xff]
    %v119 = vld [vmem:[#allocation8 + $0xe8] sm:$0xff]
    %v120 = vld [vmem:[#allocation8 + $0xf0] sm:$0xff]
    %v121 = vld [vmem:[#allocation8 + $0xf8] sm:$0xff]
    %v122 = vld [vmem:[#allocation8 + $0x100] sm:$0xff]
    %v123 = vld [vmem:[#allocation8 + $0x108] sm:$0xff]
    %v124 = vld [vmem:[#allocation8 + $0x110] sm:$0xff]
    %v125 = vld [vmem:[#allocation8 + $0x118] sm:$0xff]
    %v126 = vld [vmem:[#allocation8 + $0x120] sm:$0xff]
    %v127 = vld [vmem:[#allocation8 + $0x128] sm:$0xff]
    %v128 = vld [vmem:[#allocation8 + $0x130] sm:$0xff]
    %v129 = vld [vmem:[#allocation8 + $0x138] sm:$0xff]
    %v130 = vld [vmem:[#allocation8 + $0x140] sm:$0xff]
    %v131 = vld [vmem:[#allocation8 + $0x148] sm:$0xff]
    %v132 = vld [vmem:[#allocation8 + $0x150] sm:$0xff]
    %v133 = vld [vmem:[#allocation8 + $0x158] sm:$0xff]
    %v134 = vld [vmem:[#allocation8 + $0x160] sm:$0xff]
    %v135 = vld [vmem:[#allocation8 + $0x168] sm:$0xff]
    %v136 = vld [vmem:[#allocation8 + $0x170] sm:$0xff]
    %v137 = vld [vmem:[#allocation8 + $0x178] sm:$0xff]
    %v138 = vld [vmem:[#allocation8 + $0x180] sm:$0xff]
    %v139 = vld [vmem:[#allocation8 + $0x188] sm:$0xff]
    %v140 = vld [vmem:[#allocation8 + $0x190] sm:$0xff]
    %v141 = vld [vmem:[#allocation8 + $0x198] sm:$0xff]
    %v142 = vld [vmem:[#allocation8 + $0x1a0] sm:$0xff]
    %v143 = vld [vmem:[#allocation8 + $0x1a8] sm:$0xff]
    %v144 = vld [vmem:[#allocation8 + $0x1b0] sm:$0xff]
    %v145 = vld [vmem:[#allocation8 + $0x1b8] sm:$0xff]
    %v146 = vld [vmem:[#allocation8 + $0x1c0] sm:$0xff]
    %v147 = vld [vmem:[#allocation8 + $0x1c8] sm:$0xff]
    %v148 = vld [vmem:[#allocation8 + $0x1d0] sm:$0xff]
    %v149 = vld [vmem:[#allocation8 + $0x1d8] sm:$0xff]
    %v150 = vld [vmem:[#allocation8 + $0x1e0] sm:$0xff]
    %v151 = vld [vmem:[#allocation8 + $0x1e8] sm:$0xff]
    %v152 = vld [vmem:[#allocation8 + $0x1f0] sm:$0xff]
    %v153 = vld [vmem:[#allocation8 + $0x1f8] sm:$0xff]
    %v154 = vld [vmem:[#allocation8 + $0x200] sm:$0xff]
    %v155 = vld [vmem:[#allocation8 + $0x208] sm:$0xff]
    %v156 = vld [vmem:[#allocation8 + $0x210] sm:$0xff]
    %v157 = vld [vmem:[#allocation8 + $0x218] sm:$0xff]
    %v158 = vld [vmem:[#allocation8 + $0x220] sm:$0xff]
    %v159 = vld [vmem:[#allocation8 + $0x228] sm:$0xff]
    %v160 = vld [vmem:[#allocation8 + $0x230] sm:$0xff]
    %v161 = vld [vmem:[#allocation8 + $0x238] sm:$0xff]
    %v162 = vld [vmem:[#allocation8 + $0x240] sm:$0xff]
    %v163 = vld [vmem:[#allocation8 + $0x248] sm:$0xff]
    %v164 = vld [vmem:[#allocation8 + $0x250] sm:$0xff]
    %v165 = vld [vmem:[#allocation8 + $0x258] sm:$0xff]
    %v166 = vld [vmem:[#allocation8 + $0x260] sm:$0xff]
    %v167 = vld [vmem:[#allocation8 + $0x268] sm:$0xff]
    %v168 = vld [vmem:[#allocation8 + $0x270] sm:$0xff]
    %v169 = vld [vmem:[#allocation8 + $0x278] sm:$0xff]
    %v170 = vld [vmem:[#allocation8 + $0x280] sm:$0xff]
    %v171 = vld [vmem:[#allocation8 + $0x288] sm:$0xff]
    %v172 = vld [vmem:[#allocation8 + $0x290] sm:$0xff]
    %v173 = vld [vmem:[#allocation8 + $0x298] sm:$0xff]
    %v174 = vld [vmem:[#allocation8 + $0x2a0] sm:$0xff]
    %v175 = vld [vmem:[#allocation8 + $0x2a8] sm:$0xff]
    %v176 = vld [vmem:[#allocation8 + $0x2b0] sm:$0xff]
    %v177 = vld [vmem:[#allocation8 + $0x2b8] sm:$0xff]
    %v178 = vld [vmem:[#allocation8 + $0x2c0] sm:$0xff]
    %v179 = vld [vmem:[#allocation8 + $0x2c8] sm:$0xff]
    %v180 = vld [vmem:[#allocation8 + $0x2d0] sm:$0xff]
    %v181 = vld [vmem:[#allocation8 + $0x2d8] sm:$0xff]
    %v182 = vld [vmem:[#allocation8 + $0x2e0] sm:$0xff]
    %v183 = vld [vmem:[#allocation8 + $0x2e8] sm:$0xff]
    %v184 = vld [vmem:[#allocation8 + $0x2f0] sm:$0xff]
    %v185 = vld [vmem:[#allocation8 + $0x2f8] sm:$0xff]
    %v186 = vld [vmem:[#allocation8 + $0x300] sm:$0xff]
    %v187 = vld [vmem:[#allocation8 + $0x308] sm:$0xff]
    %v188 = vld [vmem:[#allocation8 + $0x310] sm:$0xff]
    %v189 = vld [vmem:[#allocation8 + $0x318] sm:$0xff]
    %v190 = vld [vmem:[#allocation8 + $0x320] sm:$0xff]
    %v191 = vld [vmem:[#allocation8 + $0x328] sm:$0xff]
    %v192 = vld [vmem:[#allocation8 + $0x330] sm:$0xff]
    %v193 = vld [vmem:[#allocation8 + $0x338] sm:$0xff]
    %v194 = vld [vmem:[#allocation8 + $0x340] sm:$0xff]
    %v195 = vld [vmem:[#allocation8 + $0x348] sm:$0xff]
    %v196 = vld [vmem:[#allocation8 + $0x350] sm:$0xff]
    %v197 = vld [vmem:[#allocation8 + $0x358] sm:$0xff]
    %v198 = vld [vmem:[#allocation8 + $0x360] sm:$0xff]
    %v199 = vld [vmem:[#allocation8 + $0x368] sm:$0xff]
    %v200 = vld [vmem:[#allocation8 + $0x370] sm:$0xff]
    %v201 = vld [vmem:[#allocation8 + $0x378] sm:$0xff]
    %v202 = vld [vmem:[#allocation8 + $0x380] sm:$0xff]
    %v203 = vld [vmem:[#allocation8 + $0x388] sm:$0xff]
    %v204 = vld [vmem:[#allocation8 + $0x390] sm:$0xff]
    %v205 = vld [vmem:[#allocation8 + $0x398] sm:$0xff]
    %v206 = vld [vmem:[#allocation8 + $0x3a0] sm:$0xff]
    %v207 = vld [vmem:[#allocation8 + $0x3a8] sm:$0xff]
    %v208 = vld [vmem:[#allocation8 + $0x3b0] sm:$0xff]
    %v209 = vld [vmem:[#allocation8 + $0x3b8] sm:$0xff]
    %v210 = vld [vmem:[#allocation8 + $0x3c0] sm:$0xff]
    %v211 = vld [vmem:[#allocation8 + $0x3c8] sm:$0xff]
    %v212 = vld [vmem:[#allocation8 + $0x3d0] sm:$0xff]
    %v213 = vld [vmem:[#allocation8 + $0x3d8] sm:$0xff]
    %v214 = vld [vmem:[#allocation8 + $0x3e0] sm:$0xff]
    %v215 = vld [vmem:[#allocation8 + $0x3e8] sm:$0xff]
    %v216 = vld [vmem:[#allocation8 + $0x3f0] sm:$0xff]
    %v217 = vld [vmem:[#allocation8 + $0x3f8] sm:$0xff]
    %v218 = vld [vmem:[#allocation5] ss:$2 sm:$0xf]
    %v219 = vld [vmem:[#allocation7] ss:$2 sm:$0xf]
    %v221 = vlaneseq
    %v222 = vshrl.u32 %v221, 7
    %v223 = vsub.s32 0, %v222
    %v224 = vrot.slane %v218, %v223
    %v225 = vlaneseq
    %v226 = vshrl.u32 %v225, 7
    %v227 = vsub.s32 1, %v226
    %v228 = vrot.slane %v218, %v227
    %v229 = vlaneseq
    %v230 = vshrl.u32 %v229, 7
    %v231 = vsub.s32 2, %v230
    %v232 = vrot.slane %v218, %v231
    %v233 = vlaneseq
    %v234 = vshrl.u32 %v233, 7
    %v235 = vsub.s32 3, %v234
    %v236 = vrot.slane %v218, %v235
    %v241 = vmul.f32 %v86, %v224
    %v242 = vmul.f32 %v87, %v228
    %v243 = vmul.f32 %v88, %v232
    %v244 = vmul.f32 %v89, %v236
    %v246 = vlaneseq
    %v247 = vshrl.u32 %v246, 7
    %v248 = vsub.s32 0, %v247
    %v249 = vrot.slane %v219, %v248
    %v250 = vlaneseq
    %v251 = vshrl.u32 %v250, 7
    %v252 = vsub.s32 1, %v251
    %v253 = vrot.slane %v219, %v252
    %v254 = vlaneseq
    %v255 = vshrl.u32 %v254, 7
    %v256 = vsub.s32 2, %v255
    %v257 = vrot.slane %v219, %v256
    %v258 = vlaneseq
    %v259 = vshrl.u32 %v258, 7
    %v260 = vsub.s32 3, %v259
    %v261 = vrot.slane %v219, %v260
    %v266 = vmul.f32 %v88, %v249
    %v267 = vmul.f32 %v89, %v253
    %v268 = vmul.f32 %v86, %v257
    %v269 = vmul.f32 %v87, %v261
    %v270 = vadd.f32 %v241, %v266
    %v271 = vadd.f32 %v242, %v267
    %v272 = vadd.f32 %v243, %v268
    %v273 = vadd.f32 %v244, %v269
    %v274 = vpack.c.bf16 %v270, %v270
    %v275 = vpack.c.bf16 %v271, %v271
    %v276 = vpack.c.bf16 %v272, %v272
    %v277 = vpack.c.bf16 %v273, %v273
    %v406 = vunpack.c.l.b16 %v90
    %v407 = vunpack.c.h.b16 %v90
    %v408 = vunpack.c.l.b16 %v91
    %v409 = vunpack.c.h.b16 %v91
    %v410 = vunpack.c.l.b16 %v92
    %v411 = vunpack.c.h.b16 %v92
    %v412 = vunpack.c.l.b16 %v93
    %v413 = vunpack.c.h.b16 %v93
    %v414 = vunpack.c.l.b16 %v94
    %v415 = vunpack.c.h.b16 %v94
    %v416 = vunpack.c.l.b16 %v95
    %v417 = vunpack.c.h.b16 %v95
    %v418 = vunpack.c.l.b16 %v96
    %v419 = vunpack.c.h.b16 %v96
    %v420 = vunpack.c.l.b16 %v97
    %v421 = vunpack.c.h.b16 %v97
    %v422 = vunpack.c.l.b16 %v98
    %v423 = vunpack.c.h.b16 %v98
    %v424 = vunpack.c.l.b16 %v99
    %v425 = vunpack.c.h.b16 %v99
    %v426 = vunpack.c.l.b16 %v100
    %v427 = vunpack.c.h.b16 %v100
    %v428 = vunpack.c.l.b16 %v101
    %v429 = vunpack.c.h.b16 %v101
    %v430 = vunpack.c.l.b16 %v102
    %v431 = vunpack.c.h.b16 %v102
    %v432 = vunpack.c.l.b16 %v103
    %v433 = vunpack.c.h.b16 %v103
    %v434 = vunpack.c.l.b16 %v104
    %v435 = vunpack.c.h.b16 %v104
    %v436 = vunpack.c.l.b16 %v105
    %v437 = vunpack.c.h.b16 %v105
    %v438 = vunpack.c.l.b16 %v106
    %v439 = vunpack.c.h.b16 %v106
    %v440 = vunpack.c.l.b16 %v107
    %v441 = vunpack.c.h.b16 %v107
    %v442 = vunpack.c.l.b16 %v108
    %v443 = vunpack.c.h.b16 %v108
    %v444 = vunpack.c.l.b16 %v109
    %v445 = vunpack.c.h.b16 %v109
    %v446 = vunpack.c.l.b16 %v110
    %v447 = vunpack.c.h.b16 %v110
    %v448 = vunpack.c.l.b16 %v111
    %v449 = vunpack.c.h.b16 %v111
    %v450 = vunpack.c.l.b16 %v112
    %v451 = vunpack.c.h.b16 %v112
    %v452 = vunpack.c.l.b16 %v113
    %v453 = vunpack.c.h.b16 %v113
    %v454 = vunpack.c.l.b16 %v114
    %v455 = vunpack.c.h.b16 %v114
    %v456 = vunpack.c.l.b16 %v115
    %v457 = vunpack.c.h.b16 %v115
    %v458 = vunpack.c.l.b16 %v116
    %v459 = vunpack.c.h.b16 %v116
    %v460 = vunpack.c.l.b16 %v117
    %v461 = vunpack.c.h.b16 %v117
    %v462 = vunpack.c.l.b16 %v118
    %v463 = vunpack.c.h.b16 %v118
    %v464 = vunpack.c.l.b16 %v119
    %v465 = vunpack.c.h.b16 %v119
    %v466 = vunpack.c.l.b16 %v120
    %v467 = vunpack.c.h.b16 %v120
    %v468 = vunpack.c.l.b16 %v121
    %v469 = vunpack.c.h.b16 %v121
    %v470 = vunpack.c.l.b16 %v122
    %v471 = vunpack.c.h.b16 %v122
    %v472 = vunpack.c.l.b16 %v123
    %v473 = vunpack.c.h.b16 %v123
    %v474 = vunpack.c.l.b16 %v124
    %v475 = vunpack.c.h.b16 %v124
    %v476 = vunpack.c.l.b16 %v125
    %v477 = vunpack.c.h.b16 %v125
    %v478 = vunpack.c.l.b16 %v126
    %v479 = vunpack.c.h.b16 %v126
    %v480 = vunpack.c.l.b16 %v127
    %v481 = vunpack.c.h.b16 %v127
    %v482 = vunpack.c.l.b16 %v128
    %v483 = vunpack.c.h.b16 %v128
    %v484 = vunpack.c.l.b16 %v129
    %v485 = vunpack.c.h.b16 %v129
    %v486 = vunpack.c.l.b16 %v130
    %v487 = vunpack.c.h.b16 %v130
    %v488 = vunpack.c.l.b16 %v131
    %v489 = vunpack.c.h.b16 %v131
    %v490 = vunpack.c.l.b16 %v132
    %v491 = vunpack.c.h.b16 %v132
    %v492 = vunpack.c.l.b16 %v133
    %v493 = vunpack.c.h.b16 %v133
    %v494 = vunpack.c.l.b16 %v134
    %v495 = vunpack.c.h.b16 %v134
    %v496 = vunpack.c.l.b16 %v135
    %v497 = vunpack.c.h.b16 %v135
    %v498 = vunpack.c.l.b16 %v136
    %v499 = vunpack.c.h.b16 %v136
    %v500 = vunpack.c.l.b16 %v137
    %v501 = vunpack.c.h.b16 %v137
    %v502 = vunpack.c.l.b16 %v138
    %v503 = vunpack.c.h.b16 %v138
    %v504 = vunpack.c.l.b16 %v139
    %v505 = vunpack.c.h.b16 %v139
    %v506 = vunpack.c.l.b16 %v140
    %v507 = vunpack.c.h.b16 %v140
    %v508 = vunpack.c.l.b16 %v141
    %v509 = vunpack.c.h.b16 %v141
    %v510 = vunpack.c.l.b16 %v142
    %v511 = vunpack.c.h.b16 %v142
    %v512 = vunpack.c.l.b16 %v143
    %v513 = vunpack.c.h.b16 %v143
    %v514 = vunpack.c.l.b16 %v144
    %v515 = vunpack.c.h.b16 %v144
    %v516 = vunpack.c.l.b16 %v145
    %v517 = vunpack.c.h.b16 %v145
    %v518 = vunpack.c.l.b16 %v146
    %v519 = vunpack.c.h.b16 %v146
    %v520 = vunpack.c.l.b16 %v147
    %v521 = vunpack.c.h.b16 %v147
    %v522 = vunpack.c.l.b16 %v148
    %v523 = vunpack.c.h.b16 %v148
    %v524 = vunpack.c.l.b16 %v149
    %v525 = vunpack.c.h.b16 %v149
    %v526 = vunpack.c.l.b16 %v150
    %v527 = vunpack.c.h.b16 %v150
    %v528 = vunpack.c.l.b16 %v151
    %v529 = vunpack.c.h.b16 %v151
    %v530 = vunpack.c.l.b16 %v152
    %v531 = vunpack.c.h.b16 %v152
    %v532 = vunpack.c.l.b16 %v153
    %v533 = vunpack.c.h.b16 %v153
    %v534 = vunpack.c.l.b16 %v154
    %v535 = vunpack.c.h.b16 %v154
    %v536 = vunpack.c.l.b16 %v155
    %v537 = vunpack.c.h.b16 %v155
    %v538 = vunpack.c.l.b16 %v156
    %v539 = vunpack.c.h.b16 %v156
    %v540 = vunpack.c.l.b16 %v157
    %v541 = vunpack.c.h.b16 %v157
    %v542 = vunpack.c.l.b16 %v158
    %v543 = vunpack.c.h.b16 %v158
    %v544 = vunpack.c.l.b16 %v159
    %v545 = vunpack.c.h.b16 %v159
    %v546 = vunpack.c.l.b16 %v160
    %v547 = vunpack.c.h.b16 %v160
    %v548 = vunpack.c.l.b16 %v161
    %v549 = vunpack.c.h.b16 %v161
    %v550 = vunpack.c.l.b16 %v162
    %v551 = vunpack.c.h.b16 %v162
    %v552 = vunpack.c.l.b16 %v163
    %v553 = vunpack.c.h.b16 %v163
    %v554 = vunpack.c.l.b16 %v164
    %v555 = vunpack.c.h.b16 %v164
    %v556 = vunpack.c.l.b16 %v165
    %v557 = vunpack.c.h.b16 %v165
    %v558 = vunpack.c.l.b16 %v166
    %v559 = vunpack.c.h.b16 %v166
    %v560 = vunpack.c.l.b16 %v167
    %v561 = vunpack.c.h.b16 %v167
    %v562 = vunpack.c.l.b16 %v168
    %v563 = vunpack.c.h.b16 %v168
    %v564 = vunpack.c.l.b16 %v169
    %v565 = vunpack.c.h.b16 %v169
    %v566 = vunpack.c.l.b16 %v170
    %v567 = vunpack.c.h.b16 %v170
    %v568 = vunpack.c.l.b16 %v171
    %v569 = vunpack.c.h.b16 %v171
    %v570 = vunpack.c.l.b16 %v172
    %v571 = vunpack.c.h.b16 %v172
    %v572 = vunpack.c.l.b16 %v173
    %v573 = vunpack.c.h.b16 %v173
    %v574 = vunpack.c.l.b16 %v174
    %v575 = vunpack.c.h.b16 %v174
    %v576 = vunpack.c.l.b16 %v175
    %v577 = vunpack.c.h.b16 %v175
    %v578 = vunpack.c.l.b16 %v176
    %v579 = vunpack.c.h.b16 %v176
    %v580 = vunpack.c.l.b16 %v177
    %v581 = vunpack.c.h.b16 %v177
    %v582 = vunpack.c.l.b16 %v178
    %v583 = vunpack.c.h.b16 %v178
    %v584 = vunpack.c.l.b16 %v179
    %v585 = vunpack.c.h.b16 %v179
    %v586 = vunpack.c.l.b16 %v180
    %v587 = vunpack.c.h.b16 %v180
    %v588 = vunpack.c.l.b16 %v181
    %v589 = vunpack.c.h.b16 %v181
    %v590 = vunpack.c.l.b16 %v182
    %v591 = vunpack.c.h.b16 %v182
    %v592 = vunpack.c.l.b16 %v183
    %v593 = vunpack.c.h.b16 %v183
    %v594 = vunpack.c.l.b16 %v184
    %v595 = vunpack.c.h.b16 %v184
    %v596 = vunpack.c.l.b16 %v185
    %v597 = vunpack.c.h.b16 %v185
    %v598 = vunpack.c.l.b16 %v186
    %v599 = vunpack.c.h.b16 %v186
    %v600 = vunpack.c.l.b16 %v187
    %v601 = vunpack.c.h.b16 %v187
    %v602 = vunpack.c.l.b16 %v188
    %v603 = vunpack.c.h.b16 %v188
    %v604 = vunpack.c.l.b16 %v189
    %v605 = vunpack.c.h.b16 %v189
    %v606 = vunpack.c.l.b16 %v190
    %v607 = vunpack.c.h.b16 %v190
    %v608 = vunpack.c.l.b16 %v191
    %v609 = vunpack.c.h.b16 %v191
    %v610 = vunpack.c.l.b16 %v192
    %v611 = vunpack.c.h.b16 %v192
    %v612 = vunpack.c.l.b16 %v193
    %v613 = vunpack.c.h.b16 %v193
    %v614 = vunpack.c.l.b16 %v194
    %v615 = vunpack.c.h.b16 %v194
    %v616 = vunpack.c.l.b16 %v195
    %v617 = vunpack.c.h.b16 %v195
    %v618 = vunpack.c.l.b16 %v196
    %v619 = vunpack.c.h.b16 %v196
    %v620 = vunpack.c.l.b16 %v197
    %v621 = vunpack.c.h.b16 %v197
    %v622 = vunpack.c.l.b16 %v198
    %v623 = vunpack.c.h.b16 %v198
    %v624 = vunpack.c.l.b16 %v199
    %v625 = vunpack.c.h.b16 %v199
    %v626 = vunpack.c.l.b16 %v200
    %v627 = vunpack.c.h.b16 %v200
    %v628 = vunpack.c.l.b16 %v201
    %v629 = vunpack.c.h.b16 %v201
    %v630 = vunpack.c.l.b16 %v202
    %v631 = vunpack.c.h.b16 %v202
    %v632 = vunpack.c.l.b16 %v203
    %v633 = vunpack.c.h.b16 %v203
    %v634 = vunpack.c.l.b16 %v204
    %v635 = vunpack.c.h.b16 %v204
    %v636 = vunpack.c.l.b16 %v205
    %v637 = vunpack.c.h.b16 %v205
    %v638 = vunpack.c.l.b16 %v206
    %v639 = vunpack.c.h.b16 %v206
    %v640 = vunpack.c.l.b16 %v207
    %v641 = vunpack.c.h.b16 %v207
    %v642 = vunpack.c.l.b16 %v208
    %v643 = vunpack.c.h.b16 %v208
    %v644 = vunpack.c.l.b16 %v209
    %v645 = vunpack.c.h.b16 %v209
    %v646 = vunpack.c.l.b16 %v210
    %v647 = vunpack.c.h.b16 %v210
    %v648 = vunpack.c.l.b16 %v211
    %v649 = vunpack.c.h.b16 %v211
    %v650 = vunpack.c.l.b16 %v212
    %v651 = vunpack.c.h.b16 %v212
    %v652 = vunpack.c.l.b16 %v213
    %v653 = vunpack.c.h.b16 %v213
    %v654 = vunpack.c.l.b16 %v214
    %v655 = vunpack.c.h.b16 %v214
    %v656 = vunpack.c.l.b16 %v215
    %v657 = vunpack.c.h.b16 %v215
    %v658 = vunpack.c.l.b16 %v216
    %v659 = vunpack.c.h.b16 %v216
    %v660 = vunpack.c.l.b16 %v217
    %v661 = vunpack.c.h.b16 %v217
    %v662 = vpack.c.b16 %v410, %v406
    %v663 = vpack.c.b16 %v411, %v407
    %v664 = vpack.c.b16 %v412, %v408
    %v665 = vpack.c.b16 %v413, %v409
    %v666 = vpack.c.b16 %v418, %v414
    %v667 = vpack.c.b16 %v419, %v415
    %v668 = vpack.c.b16 %v420, %v416
    %v669 = vpack.c.b16 %v421, %v417
    %v670 = vpack.c.b16 %v426, %v422
    %v671 = vpack.c.b16 %v427, %v423
    %v672 = vpack.c.b16 %v428, %v424
    %v673 = vpack.c.b16 %v429, %v425
    %v674 = vpack.c.b16 %v434, %v430
    %v675 = vpack.c.b16 %v435, %v431
    %v676 = vpack.c.b16 %v436, %v432
    %v677 = vpack.c.b16 %v437, %v433
    %v678 = vpack.c.b16 %v442, %v438
    %v679 = vpack.c.b16 %v443, %v439
    %v680 = vpack.c.b16 %v444, %v440
    %v681 = vpack.c.b16 %v445, %v441
    %v682 = vpack.c.b16 %v450, %v446
    %v683 = vpack.c.b16 %v451, %v447
    %v684 = vpack.c.b16 %v452, %v448
    %v685 = vpack.c.b16 %v453, %v449
    %v686 = vpack.c.b16 %v458, %v454
    %v687 = vpack.c.b16 %v459, %v455
    %v688 = vpack.c.b16 %v460, %v456
    %v689 = vpack.c.b16 %v461, %v457
    %v690 = vpack.c.b16 %v466, %v462
    %v691 = vpack.c.b16 %v467, %v463
    %v692 = vpack.c.b16 %v468, %v464
    %v693 = vpack.c.b16 %v469, %v465
    %v694 = vpack.c.b16 %v474, %v470
    %v695 = vpack.c.b16 %v475, %v471
    %v696 = vpack.c.b16 %v476, %v472
    %v697 = vpack.c.b16 %v477, %v473
    %v698 = vpack.c.b16 %v482, %v478
    %v699 = vpack.c.b16 %v483, %v479
    %v700 = vpack.c.b16 %v484, %v480
    %v701 = vpack.c.b16 %v485, %v481
    %v702 = vpack.c.b16 %v490, %v486
    %v703 = vpack.c.b16 %v491, %v487
    %v704 = vpack.c.b16 %v492, %v488
    %v705 = vpack.c.b16 %v493, %v489
    %v706 = vpack.c.b16 %v498, %v494
    %v707 = vpack.c.b16 %v499, %v495
    %v708 = vpack.c.b16 %v500, %v496
    %v709 = vpack.c.b16 %v501, %v497
    %v710 = vpack.c.b16 %v506, %v502
    %v711 = vpack.c.b16 %v507, %v503
    %v712 = vpack.c.b16 %v508, %v504
    %v713 = vpack.c.b16 %v509, %v505
    %v714 = vpack.c.b16 %v514, %v510
    %v715 = vpack.c.b16 %v515, %v511
    %v716 = vpack.c.b16 %v516, %v512
    %v717 = vpack.c.b16 %v517, %v513
    %v718 = vpack.c.b16 %v522, %v518
    %v719 = vpack.c.b16 %v523, %v519
    %v720 = vpack.c.b16 %v524, %v520
    %v721 = vpack.c.b16 %v525, %v521
    %v722 = vpack.c.b16 %v530, %v526
    %v723 = vpack.c.b16 %v531, %v527
    %v724 = vpack.c.b16 %v532, %v528
    %v725 = vpack.c.b16 %v533, %v529
    %v726 = vpack.c.b16 %v538, %v534
    %v727 = vpack.c.b16 %v539, %v535
    %v728 = vpack.c.b16 %v540, %v536
    %v729 = vpack.c.b16 %v541, %v537
    %v730 = vpack.c.b16 %v546, %v542
    %v731 = vpack.c.b16 %v547, %v543
    %v732 = vpack.c.b16 %v548, %v544
    %v733 = vpack.c.b16 %v549, %v545
    %v734 = vpack.c.b16 %v554, %v550
    %v735 = vpack.c.b16 %v555, %v551
    %v736 = vpack.c.b16 %v556, %v552
    %v737 = vpack.c.b16 %v557, %v553
    %v738 = vpack.c.b16 %v562, %v558
    %v739 = vpack.c.b16 %v563, %v559
    %v740 = vpack.c.b16 %v564, %v560
    %v741 = vpack.c.b16 %v565, %v561
    %v742 = vpack.c.b16 %v570, %v566
    %v743 = vpack.c.b16 %v571, %v567
    %v744 = vpack.c.b16 %v572, %v568
    %v745 = vpack.c.b16 %v573, %v569
    %v746 = vpack.c.b16 %v578, %v574
    %v747 = vpack.c.b16 %v579, %v575
    %v748 = vpack.c.b16 %v580, %v576
    %v749 = vpack.c.b16 %v581, %v577
    %v750 = vpack.c.b16 %v586, %v582
    %v751 = vpack.c.b16 %v587, %v583
    %v752 = vpack.c.b16 %v588, %v584
    %v753 = vpack.c.b16 %v589, %v585
    %v754 = vpack.c.b16 %v594, %v590
    %v755 = vpack.c.b16 %v595, %v591
    %v756 = vpack.c.b16 %v596, %v592
    %v757 = vpack.c.b16 %v597, %v593
    %v758 = vpack.c.b16 %v602, %v598
    %v759 = vpack.c.b16 %v603, %v599
    %v760 = vpack.c.b16 %v604, %v600
    %v761 = vpack.c.b16 %v605, %v601
    %v762 = vpack.c.b16 %v610, %v606
    %v763 = vpack.c.b16 %v611, %v607
    %v764 = vpack.c.b16 %v612, %v608
    %v765 = vpack.c.b16 %v613, %v609
    %v766 = vpack.c.b16 %v618, %v614
    %v767 = vpack.c.b16 %v619, %v615
    %v768 = vpack.c.b16 %v620, %v616
    %v769 = vpack.c.b16 %v621, %v617
    %v770 = vpack.c.b16 %v626, %v622
    %v771 = vpack.c.b16 %v627, %v623
    %v772 = vpack.c.b16 %v628, %v624
    %v773 = vpack.c.b16 %v629, %v625
    %v774 = vpack.c.b16 %v634, %v630
    %v775 = vpack.c.b16 %v635, %v631
    %v776 = vpack.c.b16 %v636, %v632
    %v777 = vpack.c.b16 %v637, %v633
    %v778 = vpack.c.b16 %v642, %v638
    %v779 = vpack.c.b16 %v643, %v639
    %v780 = vpack.c.b16 %v644, %v640
    %v781 = vpack.c.b16 %v645, %v641
    %v782 = vpack.c.b16 %v650, %v646
    %v783 = vpack.c.b16 %v651, %v647
    %v784 = vpack.c.b16 %v652, %v648
    %v785 = vpack.c.b16 %v653, %v649
    %v786 = vpack.c.b16 %v658, %v654
    %v787 = vpack.c.b16 %v659, %v655
    %v788 = vpack.c.b16 %v660, %v656
    %v789 = vpack.c.b16 %v661, %v657
    %918 = vmatprep.subr.bf16.mxu0 %v663
    %919 = vmatpush1.bf16.msra.mxu0 %v662
    %920 = vmatprep.subr.bf16.mxu0 %v667
    %921 = vmatpush1.bf16.msra.mxu0 %v666
    %922 = vmatprep.subr.bf16.mxu0 %v671
    %923 = vmatpush1.bf16.msra.mxu0 %v670
    %924 = vmatprep.subr.bf16.mxu0 %v675
    %925 = vmatpush1.bf16.msra.mxu0 %v674
    %926 = vmatprep.subr.bf16.mxu0 %v679
    %927 = vmatpush1.bf16.msra.mxu0 %v678
    %928 = vmatprep.subr.bf16.mxu0 %v683
    %929 = vmatpush1.bf16.msra.mxu0 %v682
    %930 = vmatprep.subr.bf16.mxu0 %v687
    %931 = vmatpush1.bf16.msra.mxu0 %v686
    %932 = vmatprep.subr.bf16.mxu0 %v691
    %933 = vmatpush1.bf16.msra.mxu0 %v690
    %934 = vmatprep.subr.bf16.mxu0 %v695
    %935 = vmatpush1.bf16.msra.mxu0 %v694
    %936 = vmatprep.subr.bf16.mxu0 %v699
    %937 = vmatpush1.bf16.msra.mxu0 %v698
    %938 = vmatprep.subr.bf16.mxu0 %v703
    %939 = vmatpush1.bf16.msra.mxu0 %v702
    %940 = vmatprep.subr.bf16.mxu0 %v707
    %941 = vmatpush1.bf16.msra.mxu0 %v706
    %942 = vmatprep.subr.bf16.mxu0 %v711
    %943 = vmatpush1.bf16.msra.mxu0 %v710
    %944 = vmatprep.subr.bf16.mxu0 %v715
    %945 = vmatpush1.bf16.msra.mxu0 %v714
    %946 = vmatprep.subr.bf16.mxu0 %v719
    %947 = vmatpush1.bf16.msra.mxu0 %v718
    %948 = vmatprep.subr.bf16.mxu0 %v723
    %949 = vmatpush1.bf16.msra.mxu0 %v722
    %950 = vmatprep.mubr.bf16.mxu0 %v275
    %951 = vmatmul.mubr.bf16.gmra.mrb[0].mxu0 %v274
    %v952 = vpop.f32.mrb[0].mxu0
    %v953 = vadd.f32 0.0, %v952
    %v954 = vpop.f32.mrb[0].mxu0
    %v955 = vadd.f32 0.0, %v954
    %v956 = vpop.f32.mrb[0].mxu0
    %v957 = vpop.f32.mrb[0].mxu0
    %958 = vdwg.mxu0
    %959 = vmatprep.subr.bf16.mxu0 %v727
    %960 = vmatpush1.bf16.msra.mxu0 %v726
    %961 = vmatprep.subr.bf16.mxu0 %v731
    %962 = vmatpush1.bf16.msra.mxu0 %v730
    %963 = vmatprep.subr.bf16.mxu0 %v735
    %964 = vmatpush1.bf16.msra.mxu0 %v734
    %965 = vmatprep.subr.bf16.mxu0 %v739
    %966 = vmatpush1.bf16.msra.mxu0 %v738
    %967 = vmatprep.subr.bf16.mxu0 %v743
    %968 = vmatpush1.bf16.msra.mxu0 %v742
    %969 = vmatprep.subr.bf16.mxu0 %v747
    %970 = vmatpush1.bf16.msra.mxu0 %v746
    %971 = vmatprep.subr.bf16.mxu0 %v751
    %972 = vmatpush1.bf16.msra.mxu0 %v750
    %973 = vmatprep.subr.bf16.mxu0 %v755
    %974 = vmatpush1.bf16.msra.mxu0 %v754
    %975 = vmatprep.subr.bf16.mxu0 %v759
    %976 = vmatpush1.bf16.msra.mxu0 %v758
    %977 = vmatprep.subr.bf16.mxu0 %v763
    %978 = vmatpush1.bf16.msra.mxu0 %v762
    %979 = vmatprep.subr.bf16.mxu0 %v767
    %980 = vmatpush1.bf16.msra.mxu0 %v766
    %981 = vmatprep.subr.bf16.mxu0 %v771
    %982 = vmatpush1.bf16.msra.mxu0 %v770
    %983 = vmatprep.subr.bf16.mxu0 %v775
    %984 = vmatpush1.bf16.msra.mxu0 %v774
    %985 = vmatprep.subr.bf16.mxu0 %v779
    %986 = vmatpush1.bf16.msra.mxu0 %v778
    %987 = vmatprep.subr.bf16.mxu0 %v783
    %988 = vmatpush1.bf16.msra.mxu0 %v782
    %989 = vmatprep.subr.bf16.mxu0 %v787
    %990 = vmatpush1.bf16.msra.mxu0 %v786
    %991 = vmatprep.mubr.bf16.mxu0 %v277
    %992 = vmatmul.mubr.bf16.gmra.mrb[0].mxu0 %v276
    %v993 = vpop.f32.mrb[0].mxu0
    %v994 = vadd.f32 %v953, %v993
    %v995 = vpop.f32.mrb[0].mxu0
    %v996 = vadd.f32 %v955, %v995
    %v997 = vpop.f32.mrb[0].mxu0
    %v998 = vpop.f32.mrb[0].mxu0
    %999 = vdwg.mxu0
    %1000 = vmatprep.subr.bf16.mxu0 %v665
    %1001 = vmatpush1.bf16.msra.mxu0 %v664
    %1002 = vmatprep.subr.bf16.mxu0 %v669
    %1003 = vmatpush1.bf16.msra.mxu0 %v668
    %1004 = vmatprep.subr.bf16.mxu0 %v673
    %1005 = vmatpush1.bf16.msra.mxu0 %v672
    %1006 = vmatprep.subr.bf16.mxu0 %v677
    %1007 = vmatpush1.bf16.msra.mxu0 %v676
    %1008 = vmatprep.subr.bf16.mxu0 %v681
    %1009 = vmatpush1.bf16.msra.mxu0 %v680
    %1010 = vmatprep.subr.bf16.mxu0 %v685
    %1011 = vmatpush1.bf16.msra.mxu0 %v684
    %1012 = vmatprep.subr.bf16.mxu0 %v689
    %1013 = vmatpush1.bf16.msra.mxu0 %v688
    %1014 = vmatprep.subr.bf16.mxu0 %v693
    %1015 = vmatpush1.bf16.msra.mxu0 %v692
    %1016 = vmatprep.subr.bf16.mxu0 %v697
    %1017 = vmatpush1.bf16.msra.mxu0 %v696
    %1018 = vmatprep.subr.bf16.mxu0 %v701
    %1019 = vmatpush1.bf16.msra.mxu0 %v700
    %1020 = vmatprep.subr.bf16.mxu0 %v705
    %1021 = vmatpush1.bf16.msra.mxu0 %v704
    %1022 = vmatprep.subr.bf16.mxu0 %v709
    %1023 = vmatpush1.bf16.msra.mxu0 %v708
    %1024 = vmatprep.subr.bf16.mxu0 %v713
    %1025 = vmatpush1.bf16.msra.mxu0 %v712
    %1026 = vmatprep.subr.bf16.mxu0 %v717
    %1027 = vmatpush1.bf16.msra.mxu0 %v716
    %1028 = vmatprep.subr.bf16.mxu0 %v721
    %1029 = vmatpush1.bf16.msra.mxu0 %v720
    %1030 = vmatprep.subr.bf16.mxu0 %v725
    %1031 = vmatpush1.bf16.msra.mxu0 %v724
    %1032 = vmatprep.mubr.bf16.mxu0 %v275
    %1033 = vmatmul.mubr.bf16.gmra.mrb[0].mxu0 %v274
    %v1034 = vpop.f32.mrb[0].mxu0
    %v1035 = vadd.f32 0.0, %v1034
    %v1036 = vpop.f32.mrb[0].mxu0
    %v1037 = vadd.f32 0.0, %v1036
    %v1038 = vpop.f32.mrb[0].mxu0
    %v1039 = vpop.f32.mrb[0].mxu0
    %1040 = vdwg.mxu0
    %1041 = vmatprep.subr.bf16.mxu0 %v729
    %1042 = vmatpush1.bf16.msra.mxu0 %v728
    %1043 = vmatprep.subr.bf16.mxu0 %v733
    %1044 = vmatpush1.bf16.msra.mxu0 %v732
    %1045 = vmatprep.subr.bf16.mxu0 %v737
    %1046 = vmatpush1.bf16.msra.mxu0 %v736
    %1047 = vmatprep.subr.bf16.mxu0 %v741
    %1048 = vmatpush1.bf16.msra.mxu0 %v740
    %1049 = vmatprep.subr.bf16.mxu0 %v745
    %1050 = vmatpush1.bf16.msra.mxu0 %v744
    %1051 = vmatprep.subr.bf16.mxu0 %v749
    %1052 = vmatpush1.bf16.msra.mxu0 %v748
    %1053 = vmatprep.subr.bf16.mxu0 %v753
    %1054 = vmatpush1.bf16.msra.mxu0 %v752
    %1055 = vmatprep.subr.bf16.mxu0 %v757
    %1056 = vmatpush1.bf16.msra.mxu0 %v756
    %1057 = vmatprep.subr.bf16.mxu0 %v761
    %1058 = vmatpush1.bf16.msra.mxu0 %v760
    %1059 = vmatprep.subr.bf16.mxu0 %v765
    %1060 = vmatpush1.bf16.msra.mxu0 %v764
    %1061 = vmatprep.subr.bf16.mxu0 %v769
    %1062 = vmatpush1.bf16.msra.mxu0 %v768
    %1063 = vmatprep.subr.bf16.mxu0 %v773
    %1064 = vmatpush1.bf16.msra.mxu0 %v772
    %1065 = vmatprep.subr.bf16.mxu0 %v777
    %1066 = vmatpush1.bf16.msra.mxu0 %v776
    %1067 = vmatprep.subr.bf16.mxu0 %v781
    %1068 = vmatpush1.bf16.msra.mxu0 %v780
    %1069 = vmatprep.subr.bf16.mxu0 %v785
    %1070 = vmatpush1.bf16.msra.mxu0 %v784
    %1071 = vmatprep.subr.bf16.mxu0 %v789
    %1072 = vmatpush1.bf16.msra.mxu0 %v788
    %1073 = vmatprep.mubr.bf16.mxu0 %v277
    %1074 = vmatmul.mubr.bf16.gmra.mrb[0].mxu0 %v276
    %v1075 = vpop.f32.mrb[0].mxu0
    %v1076 = vadd.f32 %v1035, %v1075
    %v1077 = vpop.f32.mrb[0].mxu0
    %v1078 = vadd.f32 %v1037, %v1077
    %v1079 = vpop.f32.mrb[0].mxu0
    %v1080 = vpop.f32.mrb[0].mxu0
    %1081 = vdwg.mxu0
    %s1082 = scalar_lea.vmem [#allocation5], 1
    %v1083 = vld [vmem:[%s1082] ss:$2 sm:$0xf]
    %s1084 = scalar_lea.vmem [#allocation7], 1
    %v1085 = vld [vmem:[%s1084] ss:$2 sm:$0xf]
    %v1087 = vlaneseq
    %v1088 = vshrl.u32 %v1087, 7
    %v1089 = vsub.s32 0, %v1088
    %v1090 = vrot.slane %v1083, %v1089
    %v1091 = vlaneseq
    %v1092 = vshrl.u32 %v1091, 7
    %v1093 = vsub.s32 1, %v1092
    %v1094 = vrot.slane %v1083, %v1093
    %v1095 = vlaneseq
    %v1096 = vshrl.u32 %v1095, 7
    %v1097 = vsub.s32 2, %v1096
    %v1098 = vrot.slane %v1083, %v1097
    %v1099 = vlaneseq
    %v1100 = vshrl.u32 %v1099, 7
    %v1101 = vsub.s32 3, %v1100
    %v1102 = vrot.slane %v1083, %v1101
    %v1107 = vmul.f32 %v994, %v1090
    %v1108 = vmul.f32 %v996, %v1094
    %v1109 = vmul.f32 %v1076, %v1098
    %v1110 = vmul.f32 %v1078, %v1102
    %v1112 = vlaneseq
    %v1113 = vshrl.u32 %v1112, 7
    %v1114 = vsub.s32 0, %v1113
    %v1115 = vrot.slane %v1085, %v1114
    %v1116 = vlaneseq
    %v1117 = vshrl.u32 %v1116, 7
    %v1118 = vsub.s32 1, %v1117
    %v1119 = vrot.slane %v1085, %v1118
    %v1120 = vlaneseq
    %v1121 = vshrl.u32 %v1120, 7
    %v1122 = vsub.s32 2, %v1121
    %v1123 = vrot.slane %v1085, %v1122
    %v1124 = vlaneseq
    %v1125 = vshrl.u32 %v1124, 7
    %v1126 = vsub.s32 3, %v1125
    %v1127 = vrot.slane %v1085, %v1126
    %v1132 = vmul.f32 %v1076, %v1115
    %v1133 = vmul.f32 %v1078, %v1119
    %v1134 = vmul.f32 %v994, %v1123
    %v1135 = vmul.f32 %v996, %v1127
    %v1136 = vadd.f32 %v1107, %v1132
    %v1137 = vadd.f32 %v1108, %v1133
    %v1138 = vadd.f32 %v1109, %v1134
    %v1139 = vadd.f32 %v1110, %v1135
    %v1140 = vpack.c.bf16 %v1136, %v1136
    %v1141 = vpack.c.bf16 %v1137, %v1137
    %v1142 = vpack.c.bf16 %v1138, %v1138
    %v1143 = vpack.c.bf16 %v1139, %v1139
    %1144 = vmatprep.subr.bf16.mxu0 %v663
    %1145 = vmatpush1.bf16.msra.mxu0 %v662
    %1146 = vmatprep.subr.bf16.mxu0 %v667
    %1147 = vmatpush1.bf16.msra.mxu0 %v666
    %1148 = vmatprep.subr.bf16.mxu0 %v671
    %1149 = vmatpush1.bf16.msra.mxu0 %v670
    %1150 = vmatprep.subr.bf16.mxu0 %v675
    %1151 = vmatpush1.bf16.msra.mxu0 %v674
    %1152 = vmatprep.subr.bf16.mxu0 %v679
    %1153 = vmatpush1.bf16.msra.mxu0 %v678
    %1154 = vmatprep.subr.bf16.mxu0 %v683
    %1155 = vmatpush1.bf16.msra.mxu0 %v682
    %1156 = vmatprep.subr.bf16.mxu0 %v687
    %1157 = vmatpush1.bf16.msra.mxu0 %v686
    %1158 = vmatprep.subr.bf16.mxu0 %v691
    %1159 = vmatpush1.bf16.msra.mxu0 %v690
    %1160 = vmatprep.subr.bf16.mxu0 %v695
    %1161 = vmatpush1.bf16.msra.mxu0 %v694
    %1162 = vmatprep.subr.bf16.mxu0 %v699
    %1163 = vmatpush1.bf16.msra.mxu0 %v698
    %1164 = vmatprep.subr.bf16.mxu0 %v703
    %1165 = vmatpush1.bf16.msra.mxu0 %v702
    %1166 = vmatprep.subr.bf16.mxu0 %v707
    %1167 = vmatpush1.bf16.msra.mxu0 %v706
    %1168 = vmatprep.subr.bf16.mxu0 %v711
    %1169 = vmatpush1.bf16.msra.mxu0 %v710
    %1170 = vmatprep.subr.bf16.mxu0 %v715
    %1171 = vmatpush1.bf16.msra.mxu0 %v714
    %1172 = vmatprep.subr.bf16.mxu0 %v719
    %1173 = vmatpush1.bf16.msra.mxu0 %v718
    %1174 = vmatprep.subr.bf16.mxu0 %v723
    %1175 = vmatpush1.bf16.msra.mxu0 %v722
    %1176 = vmatprep.mubr.bf16.mxu0 %v1141
    %1177 = vmatmul.mubr.bf16.gmra.mrb[0].mxu0 %v1140
    %v1178 = vpop.f32.mrb[0].mxu0
    %v1179 = vadd.f32 0.0, %v1178
    %v1180 = vpop.f32.mrb[0].mxu0
    %v1181 = vadd.f32 0.0, %v1180
    %v1182 = vpop.f32.mrb[0].mxu0
    %v1183 = vpop.f32.mrb[0].mxu0
    %1184 = vdwg.mxu0
    %1185 = vmatprep.subr.bf16.mxu0 %v727
    %1186 = vmatpush1.bf16.msra.mxu0 %v726
    %1187 = vmatprep.subr.bf16.mxu0 %v731
    %1188 = vmatpush1.bf16.msra.mxu0 %v730
    %1189 = vmatprep.subr.bf16.mxu0 %v735
    %1190 = vmatpush1.bf16.msra.mxu0 %v734
    %1191 = vmatprep.subr.bf16.mxu0 %v739
    %1192 = vmatpush1.bf16.msra.mxu0 %v738
    %1193 = vmatprep.subr.bf16.mxu0 %v743
    %1194 = vmatpush1.bf16.msra.mxu0 %v742
    %1195 = vmatprep.subr.bf16.mxu0 %v747
    %1196 = vmatpush1.bf16.msra.mxu0 %v746
    %1197 = vmatprep.subr.bf16.mxu0 %v751
    %1198 = vmatpush1.bf16.msra.mxu0 %v750
    %1199 = vmatprep.subr.bf16.mxu0 %v755
    %1200 = vmatpush1.bf16.msra.mxu0 %v754
    %1201 = vmatprep.subr.bf16.mxu0 %v759
    %1202 = vmatpush1.bf16.msra.mxu0 %v758
    %1203 = vmatprep.subr.bf16.mxu0 %v763
    %1204 = vmatpush1.bf16.msra.mxu0 %v762
    %1205 = vmatprep.subr.bf16.mxu0 %v767
    %1206 = vmatpush1.bf16.msra.mxu0 %v766
    %1207 = vmatprep.subr.bf16.mxu0 %v771
    %1208 = vmatpush1.bf16.msra.mxu0 %v770
    %1209 = vmatprep.subr.bf16.mxu0 %v775
    %1210 = vmatpush1.bf16.msra.mxu0 %v774
    %1211 = vmatprep.subr.bf16.mxu0 %v779
    %1212 = vmatpush1.bf16.msra.mxu0 %v778
    %1213 = vmatprep.subr.bf16.mxu0 %v783
    %1214 = vmatpush1.bf16.msra.mxu0 %v782
    %1215 = vmatprep.subr.bf16.mxu0 %v787
    %1216 = vmatpush1.bf16.msra.mxu0 %v786
    %1217 = vmatprep.mubr.bf16.mxu0 %v1143
    %1218 = vmatmul.mubr.bf16.gmra.mrb[0].mxu0 %v1142
    %v1219 = vpop.f32.mrb[0].mxu0
    %v1220 = vadd.f32 %v1179, %v1219
    %v1221 = vpop.f32.mrb[0].mxu0
    %v1222 = vadd.f32 %v1181, %v1221
    %v1223 = vpop.f32.mrb[0].mxu0
    %v1224 = vpop.f32.mrb[0].mxu0
    %1225 = vdwg.mxu0
    %1226 = vmatprep.subr.bf16.mxu0 %v665
    %1227 = vmatpush1.bf16.msra.mxu0 %v664
    %1228 = vmatprep.subr.bf16.mxu0 %v669
    %1229 = vmatpush1.bf16.msra.mxu0 %v668
    %1230 = vmatprep.subr.bf16.mxu0 %v673
    %1231 = vmatpush1.bf16.msra.mxu0 %v672
    %1232 = vmatprep.subr.bf16.mxu0 %v677
    %1233 = vmatpush1.bf16.msra.mxu0 %v676
    %1234 = vmatprep.subr.bf16.mxu0 %v681
    %1235 = vmatpush1.bf16.msra.mxu0 %v680
    %1236 = vmatprep.subr.bf16.mxu0 %v685
    %1237 = vmatpush1.bf16.msra.mxu0 %v684
    %1238 = vmatprep.subr.bf16.mxu0 %v689
    %1239 = vmatpush1.bf16.msra.mxu0 %v688
    %1240 = vmatprep.subr.bf16.mxu0 %v693
    %1241 = vmatpush1.bf16.msra.mxu0 %v692
    %1242 = vmatprep.subr.bf16.mxu0 %v697
    %1243 = vmatpush1.bf16.msra.mxu0 %v696
    %1244 = vmatprep.subr.bf16.mxu0 %v701
    %1245 = vmatpush1.bf16.msra.mxu0 %v700
    %1246 = vmatprep.subr.bf16.mxu0 %v705
    %1247 = vmatpush1.bf16.msra.mxu0 %v704
    %1248 = vmatprep.subr.bf16.mxu0 %v709
    %1249 = vmatpush1.bf16.msra.mxu0 %v708
    %1250 = vmatprep.subr.bf16.mxu0 %v713
    %1251 = vmatpush1.bf16.msra.mxu0 %v712
    %1252 = vmatprep.subr.bf16.mxu0 %v717
    %1253 = vmatpush1.bf16.msra.mxu0 %v716
    %1254 = vmatprep.subr.bf16.mxu0 %v721
    %1255 = vmatpush1.bf16.msra.mxu0 %v720
    %1256 = vmatprep.subr.bf16.mxu0 %v725
    %1257 = vmatpush1.bf16.msra.mxu0 %v724
    %1258 = vmatprep.mubr.bf16.mxu0 %v1141
    %1259 = vmatmul.mubr.bf16.gmra.mrb[0].mxu0 %v1140
    %v1260 = vpop.f32.mrb[0].mxu0
    %v1261 = vadd.f32 0.0, %v1260
    %v1262 = vpop.f32.mrb[0].mxu0
    %v1263 = vadd.f32 0.0, %v1262
    %v1264 = vpop.f32.mrb[0].mxu0
    %v1265 = vpop.f32.mrb[0].mxu0
    %1266 = vdwg.mxu0
    %1267 = vmatprep.subr.bf16.mxu0 %v729
    %1268 = vmatpush1.bf16.msra.mxu0 %v728
    %1269 = vmatprep.subr.bf16.mxu0 %v733
    %1270 = vmatpush1.bf16.msra.mxu0 %v732
    %1271 = vmatprep.subr.bf16.mxu0 %v737
    %1272 = vmatpush1.bf16.msra.mxu0 %v736
    %1273 = vmatprep.subr.bf16.mxu0 %v741
    %1274 = vmatpush1.bf16.msra.mxu0 %v740
    %1275 = vmatprep.subr.bf16.mxu0 %v745
    %1276 = vmatpush1.bf16.msra.mxu0 %v744
    %1277 = vmatprep.subr.bf16.mxu0 %v749
    %1278 = vmatpush1.bf16.msra.mxu0 %v748
    %1279 = vmatprep.subr.bf16.mxu0 %v753
    %1280 = vmatpush1.bf16.msra.mxu0 %v752
    %1281 = vmatprep.subr.bf16.mxu0 %v757
    %1282 = vmatpush1.bf16.msra.mxu0 %v756
    %1283 = vmatprep.subr.bf16.mxu0 %v761
    %1284 = vmatpush1.bf16.msra.mxu0 %v760
    %1285 = vmatprep.subr.bf16.mxu0 %v765
    %1286 = vmatpush1.bf16.msra.mxu0 %v764
    %1287 = vmatprep.subr.bf16.mxu0 %v769
    %1288 = vmatpush1.bf16.msra.mxu0 %v768
    %1289 = vmatprep.subr.bf16.mxu0 %v773
    %1290 = vmatpush1.bf16.msra.mxu0 %v772
    %1291 = vmatprep.subr.bf16.mxu0 %v777
    %1292 = vmatpush1.bf16.msra.mxu0 %v776
    %1293 = vmatprep.subr.bf16.mxu0 %v781
    %1294 = vmatpush1.bf16.msra.mxu0 %v780
    %1295 = vmatprep.subr.bf16.mxu0 %v785
    %1296 = vmatpush1.bf16.msra.mxu0 %v784
    %1297 = vmatprep.subr.bf16.mxu0 %v789
    %1298 = vmatpush1.bf16.msra.mxu0 %v788
    %1299 = vmatprep.mubr.bf16.mxu0 %v1143
    %1300 = vmatmul.mubr.bf16.gmra.mrb[0].mxu0 %v1142
    %v1301 = vpop.f32.mrb[0].mxu0
    %v1302 = vadd.f32 %v1261, %v1301
    %v1303 = vpop.f32.mrb[0].mxu0
    %v1304 = vadd.f32 %v1263, %v1303
    %v1305 = vpop.f32.mrb[0].mxu0
    %v1306 = vpop.f32.mrb[0].mxu0
    %1307 = vdwg.mxu0
    %v1308 = vmul.f32 %v1220, %v1220
    %v1309 = vmul.f32 %v1222, %v1222
    %v1310 = vmul.f32 %v1302, %v1302
    %v1311 = vmul.f32 %v1304, %v1304
    %v1312 = vld [vmem:[#allocation10] sm:$0xff]
    %v1313 = vld [vmem:[#allocation10 + $0x8] sm:$0xff]
    %v1314 = vld [vmem:[#allocation10 + $0x10] sm:$0xff]
    %v1315 = vld [vmem:[#allocation10 + $0x18] sm:$0xff]
    %v1316 = vld [vmem:[#allocation10 + $0x20] sm:$0xff]
    %v1317 = vld [vmem:[#allocation10 + $0x28] sm:$0xff]
    %v1318 = vld [vmem:[#allocation10 + $0x30] sm:$0xff]
    %v1319 = vld [vmem:[#allocation10 + $0x38] sm:$0xff]
    %v1320 = vld [vmem:[#allocation10 + $0x40] sm:$0xff]
    %v1321 = vld [vmem:[#allocation10 + $0x48] sm:$0xff]
    %v1322 = vld [vmem:[#allocation10 + $0x50] sm:$0xff]
    %v1323 = vld [vmem:[#allocation10 + $0x58] sm:$0xff]
    %v1324 = vld [vmem:[#allocation10 + $0x60] sm:$0xff]
    %v1325 = vld [vmem:[#allocation10 + $0x68] sm:$0xff]
    %v1326 = vld [vmem:[#allocation10 + $0x70] sm:$0xff]
    %v1327 = vld [vmem:[#allocation10 + $0x78] sm:$0xff]
    %v1328 = vld [vmem:[#allocation10 + $0x80] sm:$0xff]
    %v1329 = vld [vmem:[#allocation10 + $0x88] sm:$0xff]
    %v1330 = vld [vmem:[#allocation10 + $0x90] sm:$0xff]
    %v1331 = vld [vmem:[#allocation10 + $0x98] sm:$0xff]
    %v1332 = vld [vmem:[#allocation10 + $0xa0] sm:$0xff]
    %v1333 = vld [vmem:[#allocation10 + $0xa8] sm:$0xff]
    %v1334 = vld [vmem:[#allocation10 + $0xb0] sm:$0xff]
    %v1335 = vld [vmem:[#allocation10 + $0xb8] sm:$0xff]
    %v1336 = vld [vmem:[#allocation10 + $0xc0] sm:$0xff]
    %v1337 = vld [vmem:[#allocation10 + $0xc8] sm:$0xff]
    %v1338 = vld [vmem:[#allocation10 + $0xd0] sm:$0xff]
    %v1339 = vld [vmem:[#allocation10 + $0xd8] sm:$0xff]
    %v1340 = vld [vmem:[#allocation10 + $0xe0] sm:$0xff]
    %v1341 = vld [vmem:[#allocation10 + $0xe8] sm:$0xff]
    %v1342 = vld [vmem:[#allocation10 + $0xf0] sm:$0xff]
    %v1343 = vld [vmem:[#allocation10 + $0xf8] sm:$0xff]
    %v1344 = vld [vmem:[#allocation10 + $0x100] sm:$0xff]
    %v1345 = vld [vmem:[#allocation10 + $0x108] sm:$0xff]
    %v1346 = vld [vmem:[#allocation10 + $0x110] sm:$0xff]
    %v1347 = vld [vmem:[#allocation10 + $0x118] sm:$0xff]
    %v1348 = vld [vmem:[#allocation10 + $0x120] sm:$0xff]
    %v1349 = vld [vmem:[#allocation10 + $0x128] sm:$0xff]
    %v1350 = vld [vmem:[#allocation10 + $0x130] sm:$0xff]
    %v1351 = vld [vmem:[#allocation10 + $0x138] sm:$0xff]
    %v1352 = vld [vmem:[#allocation10 + $0x140] sm:$0xff]
    %v1353 = vld [vmem:[#allocation10 + $0x148] sm:$0xff]
    %v1354 = vld [vmem:[#allocation10 + $0x150] sm:$0xff]
    %v1355 = vld [vmem:[#allocation10 + $0x158] sm:$0xff]
    %v1356 = vld [vmem:[#allocation10 + $0x160] sm:$0xff]
    %v1357 = vld [vmem:[#allocation10 + $0x168] sm:$0xff]
    %v1358 = vld [vmem:[#allocation10 + $0x170] sm:$0xff]
    %v1359 = vld [vmem:[#allocation10 + $0x178] sm:$0xff]
    %v1360 = vld [vmem:[#allocation10 + $0x180] sm:$0xff]
    %v1361 = vld [vmem:[#allocation10 + $0x188] sm:$0xff]
    %v1362 = vld [vmem:[#allocation10 + $0x190] sm:$0xff]
    %v1363 = vld [vmem:[#allocation10 + $0x198] sm:$0xff]
    %v1364 = vld [vmem:[#allocation10 + $0x1a0] sm:$0xff]
    %v1365 = vld [vmem:[#allocation10 + $0x1a8] sm:$0xff]
    %v1366 = vld [vmem:[#allocation10 + $0x1b0] sm:$0xff]
    %v1367 = vld [vmem:[#allocation10 + $0x1b8] sm:$0xff]
    %v1368 = vld [vmem:[#allocation10 + $0x1c0] sm:$0xff]
    %v1369 = vld [vmem:[#allocation10 + $0x1c8] sm:$0xff]
    %v1370 = vld [vmem:[#allocation10 + $0x1d0] sm:$0xff]
    %v1371 = vld [vmem:[#allocation10 + $0x1d8] sm:$0xff]
    %v1372 = vld [vmem:[#allocation10 + $0x1e0] sm:$0xff]
    %v1373 = vld [vmem:[#allocation10 + $0x1e8] sm:$0xff]
    %v1374 = vld [vmem:[#allocation10 + $0x1f0] sm:$0xff]
    %v1375 = vld [vmem:[#allocation10 + $0x1f8] sm:$0xff]
    %v1376 = vld [vmem:[%s5] sm:$0x1]
    %v1378 = vlaneseq
    %v1379 = vshrl.u32 %v1378, 7
    %v1380 = vsub.s32 0, %v1379
    %v1381 = vrot.slane %v1376, %v1380
    %1383 = vmatprep.subr.mxu0 0.0
    %1384 = vmatpush1.msra.mxu0 %v1312
    %1385 = vmatprep.subr.mxu0 0.0
    %1386 = vmatpush1.msra.mxu0 %v1313
    %1387 = vmatprep.subr.mxu0 0.0
    %1388 = vmatpush1.msra.mxu0 %v1314
    %1389 = vmatprep.subr.mxu0 0.0
    %1390 = vmatpush1.msra.mxu0 %v1315
    %1391 = vmatprep.subr.mxu0 0.0
    %1392 = vmatpush1.msra.mxu0 %v1316
    %1393 = vmatprep.subr.mxu0 0.0
    %1394 = vmatpush1.msra.mxu0 %v1317
    %1395 = vmatprep.subr.mxu0 0.0
    %1396 = vmatpush1.msra.mxu0 %v1318
    %1397 = vmatprep.subr.mxu0 0.0
    %1398 = vmatpush1.msra.mxu0 %v1319
    %1399 = vmatprep.subr.mxu0 0.0
    %1400 = vmatpush1.msra.mxu0 %v1320
    %1401 = vmatprep.subr.mxu0 0.0
    %1402 = vmatpush1.msra.mxu0 %v1321
    %1403 = vmatprep.subr.mxu0 0.0
    %1404 = vmatpush1.msra.mxu0 %v1322
    %1405 = vmatprep.subr.mxu0 0.0
    %1406 = vmatpush1.msra.mxu0 %v1323
    %1407 = vmatprep.subr.mxu0 0.0
    %1408 = vmatpush1.msra.mxu0 %v1324
    %1409 = vmatprep.subr.mxu0 0.0
    %1410 = vmatpush1.msra.mxu0 %v1325
    %1411 = vmatprep.subr.mxu0 0.0
    %1412 = vmatpush1.msra.mxu0 %v1326
    %1413 = vmatprep.subr.mxu0 0.0
    %1414 = vmatpush1.msra.mxu0 %v1327
    %1415 = vmatprep.subr.mxu0 0.0
    %1416 = vmatpush1.msra.mxu0 %v1328
    %1417 = vmatprep.subr.mxu0 0.0
    %1418 = vmatpush1.msra.mxu0 %v1329
    %1419 = vmatprep.subr.mxu0 0.0
    %1420 = vmatpush1.msra.mxu0 %v1330
    %1421 = vmatprep.subr.mxu0 0.0
    %1422 = vmatpush1.msra.mxu0 %v1331
    %1423 = vmatprep.subr.mxu0 0.0
    %1424 = vmatpush1.msra.mxu0 %v1332
    %1425 = vmatprep.subr.mxu0 0.0
    %1426 = vmatpush1.msra.mxu0 %v1333
    %1427 = vmatprep.subr.mxu0 0.0
    %1428 = vmatpush1.msra.mxu0 %v1334
    %1429 = vmatprep.subr.mxu0 0.0
    %1430 = vmatpush1.msra.mxu0 %v1335
    %1431 = vmatprep.subr.mxu0 0.0
    %1432 = vmatpush1.msra.mxu0 %v1336
    %1433 = vmatprep.subr.mxu0 0.0
    %1434 = vmatpush1.msra.mxu0 %v1337
    %1435 = vmatprep.subr.mxu0 0.0
    %1436 = vmatpush1.msra.mxu0 %v1338
    %1437 = vmatprep.subr.mxu0 0.0
    %1438 = vmatpush1.msra.mxu0 %v1339
    %1439 = vmatprep.subr.mxu0 0.0
    %1440 = vmatpush1.msra.mxu0 %v1340
    %1441 = vmatprep.subr.mxu0 0.0
    %1442 = vmatpush1.msra.mxu0 %v1341
    %1443 = vmatprep.subr.mxu0 0.0
    %1444 = vmatpush1.msra.mxu0 %v1342
    %1445 = vmatprep.subr.mxu0 0.0
    %1446 = vmatpush1.msra.mxu0 %v1343
    %1447 = vmatprep.mubr.f32.mxu0 %v1309
    %1448 = vmatmul.mubr.f32.gmra.mrb[0].mxu0 %v1308
    %v1449 = vpop.f32.mrb[0].mxu0
    %v1450 = vadd.f32 %v1381, %v1449
    %v1451 = vpop.f32.mrb[0].mxu0
    %1452 = vdwg.mxu0
    %1453 = vmatprep.subr.mxu0 0.0
    %1454 = vmatpush1.msra.mxu0 %v1344
    %1455 = vmatprep.subr.mxu0 0.0
    %1456 = vmatpush1.msra.mxu0 %v1345
    %1457 = vmatprep.subr.mxu0 0.0
    %1458 = vmatpush1.msra.mxu0 %v1346
    %1459 = vmatprep.subr.mxu0 0.0
    %1460 = vmatpush1.msra.mxu0 %v1347
    %1461 = vmatprep.subr.mxu0 0.0
    %1462 = vmatpush1.msra.mxu0 %v1348
    %1463 = vmatprep.subr.mxu0 0.0
    %1464 = vmatpush1.msra.mxu0 %v1349
    %1465 = vmatprep.subr.mxu0 0.0
    %1466 = vmatpush1.msra.mxu0 %v1350
    %1467 = vmatprep.subr.mxu0 0.0
    %1468 = vmatpush1.msra.mxu0 %v1351
    %1469 = vmatprep.subr.mxu0 0.0
    %1470 = vmatpush1.msra.mxu0 %v1352
    %1471 = vmatprep.subr.mxu0 0.0
    %1472 = vmatpush1.msra.mxu0 %v1353
    %1473 = vmatprep.subr.mxu0 0.0
    %1474 = vmatpush1.msra.mxu0 %v1354
    %1475 = vmatprep.subr.mxu0 0.0
    %1476 = vmatpush1.msra.mxu0 %v1355
    %1477 = vmatprep.subr.mxu0 0.0
    %1478 = vmatpush1.msra.mxu0 %v1356
    %1479 = vmatprep.subr.mxu0 0.0
    %1480 = vmatpush1.msra.mxu0 %v1357
    %1481 = vmatprep.subr.mxu0 0.0
    %1482 = vmatpush1.msra.mxu0 %v1358
    %1483 = vmatprep.subr.mxu0 0.0
    %1484 = vmatpush1.msra.mxu0 %v1359
    %1485 = vmatprep.subr.mxu0 0.0
    %1486 = vmatpush1.msra.mxu0 %v1360
    %1487 = vmatprep.subr.mxu0 0.0
    %1488 = vmatpush1.msra.mxu0 %v1361
    %1489 = vmatprep.subr.mxu0 0.0
    %1490 = vmatpush1.msra.mxu0 %v1362
    %1491 = vmatprep.subr.mxu0 0.0
    %1492 = vmatpush1.msra.mxu0 %v1363
    %1493 = vmatprep.subr.mxu0 0.0
    %1494 = vmatpush1.msra.mxu0 %v1364
    %1495 = vmatprep.subr.mxu0 0.0
    %1496 = vmatpush1.msra.mxu0 %v1365
    %1497 = vmatprep.subr.mxu0 0.0
    %1498 = vmatpush1.msra.mxu0 %v1366
    %1499 = vmatprep.subr.mxu0 0.0
    %1500 = vmatpush1.msra.mxu0 %v1367
    %1501 = vmatprep.subr.mxu0 0.0
    %1502 = vmatpush1.msra.mxu0 %v1368
    %1503 = vmatprep.subr.mxu0 0.0
    %1504 = vmatpush1.msra.mxu0 %v1369
    %1505 = vmatprep.subr.mxu0 0.0
    %1506 = vmatpush1.msra.mxu0 %v1370
    %1507 = vmatprep.subr.mxu0 0.0
    %1508 = vmatpush1.msra.mxu0 %v1371
    %1509 = vmatprep.subr.mxu0 0.0
    %1510 = vmatpush1.msra.mxu0 %v1372
    %1511 = vmatprep.subr.mxu0 0.0
    %1512 = vmatpush1.msra.mxu0 %v1373
    %1513 = vmatprep.subr.mxu0 0.0
    %1514 = vmatpush1.msra.mxu0 %v1374
    %1515 = vmatprep.subr.mxu0 0.0
    %1516 = vmatpush1.msra.mxu0 %v1375
    %1517 = vmatprep.mubr.f32.mxu0 %v1311
    %1518 = vmatmul.mubr.f32.gmra.mrb[0].mxu0 %v1310
    %v1519 = vpop.f32.mrb[0].mxu0
    %v1520 = vadd.f32 %v1450, %v1519
    %v1521 = vpop.f32.mrb[0].mxu0
    %1522 = vdwg.mxu0
    %1523 = vst [vmem:[#allocation11] sm:$0xff] %v1520
    // Predicated region
    $region46: #{tpu_custom_call.1} parent=1 // pred_check
      _
    $region47: #{tpu_custom_call.1} parent=1 // pred_check_branch
      %1525 = sbr.rel (0) target = $region49
    $region48: #{tpu_custom_call.1} parent=1 // pred_region
      %s1527 = ssub.s32 128, 128
      %1528 = vsyncadd [#allocation4], %s1527
      %s1530 = sshll.u32 [#allocation11], 4
      %s1531 = int_to_ptr.vmem [resolvable:$true] %s1530
      %1533 = dma.vmem_to_hbm [thread:$0]  %s1531, 128, %s6, [#allocation4]
    $region49: #{tpu_custom_call.1} parent=1 // pred_fallthru
      _
    // Predicated region
    $region50: #{tpu_custom_call.1} parent=1 // pred_check
      _
    $region51: #{tpu_custom_call.1} parent=1 // pred_check_branch
      %1535 = sbr.rel (0) target = $region53
    $region52: #{tpu_custom_call.1} parent=1 // pred_region
      %1536 = dma.done [#allocation4], 128
    $region53: #{tpu_custom_call.1} parent=1 // pred_fallthru
      _
    %1537 = vsyncpa [#allocation3], 1
    %1538 = vsyncpa [#allocation6], 1
    %1539 = vsyncpa [#allocation9], 1
    %1540 = vsyncpa [#allocation4], 1

</llo_original>
